<compile_context>
chip_gen: v5e
topology: v5e:2x2
jax: 0.10.0
libtpu: 0.0.40
codegen_flags: <defaults>
</compile_context>

<pallas_src>
import functools

import jax
import jax.numpy as jnp
from jax.experimental import pallas as pl
from jax.experimental.pallas import tpu as pltpu


def _cdiv(a, b):
    return -(-a // b)


def _round_up(n, m):
    return _cdiv(n, m) * m


# ----------------------------------------------------------------------------
# Kernel
# ----------------------------------------------------------------------------
def _sf_policy_kernel(x_ref, w1_ref, b1_ref, w2_ref, b2_ref, w3_ref, b3_ref,
                      out_ref, *, bf16_tanh):
    bf = jnp.bfloat16
    # x arrives as f32; cast to bf16 here instead of a separate host HBM pass.
    x = x_ref[...].astype(bf)                                       # (TB, OBS_P)

    # encoder layer 1: tanh(x @ W1 + b1) -- bf16 MXU matmul, f32 accumulate
    z1 = jnp.dot(x, w1_ref[...], preferred_element_type=jnp.float32) + b1_ref[...]
    if bf16_tanh:
        h1 = jnp.tanh(z1.astype(bf))       # v6e/v7x: bf16 EUP path, no extra cast
    else:
        h1 = jnp.tanh(z1).astype(bf)       # v5e/older: keep tanh in f32

    # encoder layer 2: tanh(h1 @ W2 + b2)
    z2 = jnp.dot(h1, w2_ref[...], preferred_element_type=jnp.float32) + b2_ref[...]
    h2 = jnp.tanh(z2.astype(bf)) if bf16_tanh else jnp.tanh(z2).astype(bf)

    # action-parameterization head: h2 @ W3 + b3 (no activation)
    out = jnp.dot(h2, w3_ref[...], preferred_element_type=jnp.float32) + b3_ref[...]
    out_ref[...] = out.astype(out_ref.dtype)   # bf16, lane-dense unmasked stores


# ----------------------------------------------------------------------------
# Parameter preparation (once, outside the hot path)
# ----------------------------------------------------------------------------
def prepare_params(params):
    """Pad to TPU-friendly shapes (zero padding -> numerically identical) and
    cast weights to bf16 for MXU/DMA efficiency."""
    w1 = jnp.asarray(params["w1"], jnp.float32)
    b1 = jnp.asarray(params["b1"], jnp.float32)
    w2 = jnp.asarray(params["w2"], jnp.float32)
    b2 = jnp.asarray(params["b2"], jnp.float32)
    w3 = jnp.asarray(params["w3"], jnp.float32)
    b3 = jnp.asarray(params["b3"], jnp.float32)

    obs, hid = w1.shape
    act = w3.shape[1]
    obs_p = _round_up(obs, 32)    # K-dim alignment for the first matmul
    hid_p = _round_up(hid, 128)   # fill the 128-lane vreg / MXU tile
    act_p = _round_up(act, 128)   # lane-dense output stores

    def pad_w(w, r, c):
        return jnp.pad(w, ((0, r - w.shape[0]),
                           (0, c - w.shape[1]))).astype(jnp.bfloat16)

    def pad_b(b, c):
        b = b.reshape(1, -1)
        return jnp.pad(b, ((0, 0), (0, c - b.shape[1]))).astype(jnp.float32)

    return {
        "w1": pad_w(w1, obs_p, hid_p), "b1": pad_b(b1, hid_p),
        "w2": pad_w(w2, hid_p, hid_p), "b2": pad_b(b2, hid_p),
        "w3": pad_w(w3, hid_p, act_p), "b3": pad_b(b3, act_p),
        "obs_dim": obs, "act_dim": act,
    }


# ----------------------------------------------------------------------------
# Tile selection + chip-dependent tanh precision
# ----------------------------------------------------------------------------
def _pick_tb(B):
    # Per-step-overhead / writeback bound -> big tiles.  Keep >=4 grid steps at
    # large B (input/output DMA overlap) and >=2 steps at moderate B so the
    # "parallel" batch axis can shard across both TensorCores on v7x.
    if B >= 4096:
        min_steps = 4
    elif B >= 512:
        min_steps = 2
    else:
        min_steps = 1
    steps = max(min_steps, _cdiv(B, 2048))
    return max(16, _round_up(_cdiv(B, steps), 16))


_BF16_TANH_CACHE = None


def _default_bf16_tanh():
    """bf16 tanh on chips with a bf16 EUP/VPU path (v6e / v7x); f32 otherwise."""
    global _BF16_TANH_CACHE
    if _BF16_TANH_CACHE is None:
        try:
            kind = jax.devices()[0].device_kind.lower()
            _BF16_TANH_CACHE = not any(v in kind for v in ("v2", "v3", "v4", "v5"))
        except Exception:
            _BF16_TANH_CACHE = False
    return _BF16_TANH_CACHE


# ----------------------------------------------------------------------------
# Forward pass
# ----------------------------------------------------------------------------
@functools.partial(jax.jit, static_argnames=("tb", "act_dim", "bf16_tanh"))
def _forward_jit(x, w1, b1, w2, b2, w3, b3, *, tb, act_dim, bf16_tanh):
    B, obs = x.shape
    obs_p, hid_p = w1.shape
    act_p = w3.shape[1]
    b_pad = _round_up(B, tb)

    # Batch-tail + obs zero padding, kept in f32 (no host-side cast pass);
    # allow_input_fusion lets XLA fuse this pad straight into the kernel input.
    x_p = jnp.pad(x.astype(jnp.float32), ((0, b_pad - B), (0, obs_p - obs)))

    def weight_spec(shape):
        # Constant index_map: weights/biases DMA'd once, VMEM-resident.
        return pl.BlockSpec(shape, lambda i: (0, 0))

    kernel = functools.partial(_sf_policy_kernel, bf16_tanh=bf16_tanh)
    out = pl.pallas_call(
        kernel,
        out_shape=jax.ShapeDtypeStruct((b_pad, act_p), jnp.bfloat16),
        grid=(b_pad // tb,),
        in_specs=[
            pl.BlockSpec((tb, obs_p), lambda i: (i, 0)),   # pipelined x tile
            weight_spec((obs_p, hid_p)),                   # W1
            weight_spec((1, hid_p)),                       # b1
            weight_spec((hid_p, hid_p)),                   # W2
            weight_spec((1, hid_p)),                       # b2
            weight_spec((hid_p, act_p)),                   # W3
            weight_spec((1, act_p)),                       # b3
        ],
        out_specs=pl.BlockSpec((tb, act_p), lambda i: (i, 0)),
        compiler_params=pltpu.CompilerParams(
            dimension_semantics=("parallel",),             # batch -> both TCs on v7x
            allow_input_fusion=[True] + [False] * 6),
    )(x_p, w1, b1, w2, b2, w3, b3)

    return out[:B, :act_dim].astype(jnp.float32)


def sf_policy_forward(x, pp, *, tb=None, bf16_tanh=None):
    """x: (B, obs_dim) float32.  pp: prepared (padded, bf16) params."""
    B, obs = x.shape
    assert obs == pp["obs_dim"]
    if tb is None:
        tb = _pick_tb(B)
    tb = max(16, _round_up(int(tb), 16))   # (16,128) native bf16 tile
    if bf16_tanh is None:
        bf16_tanh = _default_bf16_tanh()
    return _forward_jit(x, pp["w1"], pp["b1"], pp["w2"], pp["b2"],
                        pp["w3"], pp["b3"],
                        tb=tb, act_dim=pp["act_dim"], bf16_tanh=bool(bf16_tanh))


# ----------------------------------------------------------------------------
# Synthetic init + references
# ----------------------------------------------------------------------------
def init_params(key, obs_dim, hidden, act_dim):
    """Deterministic synthetic init (shapes match nn.Linear weights^T)."""
    k1, k2, k3 = jax.random.split(key, 3)
    scale = 0.1
    return {
        "w1": scale * jax.random.normal(k1, (obs_dim, hidden), jnp.float32),
        "b1": jnp.zeros((1, hidden), jnp.float32),
        "w2": scale * jax.random.normal(k2, (hidden, hidden), jnp.float32),
        "b2": jnp.zeros((1, hidden), jnp.float32),
        "w3": scale * jax.random.normal(k3, (hidden, act_dim), jnp.float32),
        "b3": jnp.zeros((1, act_dim), jnp.float32),
    }


def _ref_forward_f32(x, p):
    h1 = jnp.tanh(x @ p["w1"] + p["b1"])
    h2 = jnp.tanh(h1 @ p["w2"] + p["b2"])
    return h2 @ p["w3"] + p["b3"]


def _ref_forward_quant(x, p, bf16_tanh):
    """Mirror kernel numerics: bf16 matmul operands, f32 accumulation,
    per-chip tanh precision, bf16 output rounding."""
    bf = jnp.bfloat16

    def mm(a, w):
        return jnp.dot(a, jnp.asarray(w, bf), preferred_element_type=jnp.float32)

    def act(z):
        return jnp.tanh(z.astype(bf)) if bf16_tanh else jnp.tanh(z).astype(bf)

    h1 = act(mm(x.astype(bf), p["w1"]) + p["b1"])
    h2 = act(mm(h1, p["w2"]) + p["b2"])
    out = mm(h2, p["w3"]) + p["b3"]
    return out.astype(bf).astype(jnp.float32)


if __name__ == "__main__":
    B, OBS, HIDDEN, ACT = 8, 18, 64, 4   # quadrotor-style obs -> 4 motor thrusts
    key = jax.random.PRNGKey(0)
    kx, kp, kx2, kx3 = jax.random.split(key, 4)
    x = jax.random.normal(kx, (B, OBS), jnp.float32)
    params = init_params(kp, OBS, HIDDEN, ACT)
    pp = prepare_params(params)
    bf16_tanh = _default_bf16_tanh()

    # --- small batch (single grid point) ---
    out = jax.block_until_ready(sf_policy_forward(x, pp))
    assert out.shape == (B, ACT) and out.dtype == jnp.float32
    assert jnp.allclose(out, _ref_forward_quant(x, params, bf16_tanh),
                        atol=2e-2, rtol=2e-2)
    assert jnp.allclose(out, _ref_forward_f32(x, params), atol=3e-2, rtol=3e-2)

    # --- multi-tile grid + ragged batch tail (exercise the pipelined path) ---
    B2 = 40
    x2 = jax.random.normal(kx2, (B2, OBS), jnp.float32)
    out2 = jax.block_until_ready(sf_policy_forward(x2, pp, tb=16))
    assert out2.shape == (B2, ACT)
    assert jnp.allclose(out2, _ref_forward_quant(x2, params, bf16_tanh),
                        atol=2e-2, rtol=2e-2)
    assert jnp.allclose(out2, _ref_forward_f32(x2, params), atol=3e-2, rtol=3e-2)

    # --- default tile selection at moderate batch (>= 2 grid steps) ---
    B3 = 1000
    x3 = jax.random.normal(kx3, (B3, OBS), jnp.float32)
    out3 = jax.block_until_ready(sf_policy_forward(x3, pp))
    assert out3.shape == (B3, ACT)
    assert jnp.allclose(out3, _ref_forward_f32(x3, params), atol=3e-2, rtol=3e-2)

    print("KERNEL_OK")
</pallas_src>

<mosaic_0001>
module attributes {stable_mosaic.version = 11 : i64} {
  func.func @_sf_policy_kernel(%arg0: i32, %arg1: memref<16x32xf32, #tpu.memory_space<vmem>>, %arg2: memref<32x128xbf16, #tpu.memory_space<vmem>>, %arg3: memref<1x128xf32, #tpu.memory_space<vmem>>, %arg4: memref<128x128xbf16, #tpu.memory_space<vmem>>, %arg5: memref<1x128xf32, #tpu.memory_space<vmem>>, %arg6: memref<128x128xbf16, #tpu.memory_space<vmem>>, %arg7: memref<1x128xf32, #tpu.memory_space<vmem>>, %arg8: memref<16x128xbf16, #tpu.memory_space<vmem>>) attributes {dimension_semantics = [#tpu.dimension_semantics<parallel>], iteration_bounds = array<i64: 1>, scalar_prefetch = 0 : i64, scratch_operands = 0 : i64, tpu.core_type = #tpu.core_type<tc>, window_params = [{transform_indices = @transform_0, window_bounds = array<i64: 16, 32>}, {pipeline_mode = #tpu.pipeline_mode<synchronous>, transform_indices = @transform_1, window_bounds = array<i64: 32, 128>}, {pipeline_mode = #tpu.pipeline_mode<synchronous>, transform_indices = @transform_2, window_bounds = array<i64: 1, 128>}, {pipeline_mode = #tpu.pipeline_mode<synchronous>, transform_indices = @transform_3, window_bounds = array<i64: 128, 128>}, {pipeline_mode = #tpu.pipeline_mode<synchronous>, transform_indices = @transform_4, window_bounds = array<i64: 1, 128>}, {pipeline_mode = #tpu.pipeline_mode<synchronous>, transform_indices = @transform_5, window_bounds = array<i64: 128, 128>}, {pipeline_mode = #tpu.pipeline_mode<synchronous>, transform_indices = @transform_6, window_bounds = array<i64: 1, 128>}, {transform_indices = @transform_7, window_bounds = array<i64: 16, 128>}]} {
    %c0 = arith.constant 0 : index
    %c0_0 = arith.constant 0 : index
    %0 = vector.load %arg1[%c0, %c0_0] : memref<16x32xf32, #tpu.memory_space<vmem>>, vector<16x32xf32>
    %1 = arith.truncf %0 : vector<16x32xf32> to vector<16x32xbf16>
    %c0_1 = arith.constant 0 : index
    %c0_2 = arith.constant 0 : index
    %2 = vector.load %arg2[%c0_1, %c0_2] : memref<32x128xbf16, #tpu.memory_space<vmem>>, vector<32x128xbf16>
    %cst = arith.constant dense<0.000000e+00> : vector<16x128xf32>
    %3 = tpu.matmul %1, %2, %cst {dimension_numbers = #tpu.dot_dimension_numbers<[1], [0], [0], [1], [0, 0, 1, 1], [], []>} : vector<16x32xbf16>, vector<32x128xbf16>, vector<16x128xf32> -> vector<16x128xf32>
    %c0_3 = arith.constant 0 : index
    %c0_4 = arith.constant 0 : index
    %4 = vector.load %arg3[%c0_3, %c0_4] : memref<1x128xf32, #tpu.memory_space<vmem>>, vector<1x128xf32>
    %5 = vector.broadcast %4 : vector<1x128xf32> to vector<16x128xf32>
    %6 = arith.addf %3, %5 : vector<16x128xf32>
    %7 = arith.truncf %6 : vector<16x128xf32> to vector<16x128xbf16>
    %8 = math.tanh %7 : vector<16x128xbf16>
    %c0_5 = arith.constant 0 : index
    %c0_6 = arith.constant 0 : index
    %9 = vector.load %arg4[%c0_5, %c0_6] : memref<128x128xbf16, #tpu.memory_space<vmem>>, vector<128x128xbf16>
    %cst_7 = arith.constant dense<0.000000e+00> : vector<16x128xf32>
    %10 = tpu.matmul %8, %9, %cst_7 {dimension_numbers = #tpu.dot_dimension_numbers<[1], [0], [0], [1], [0, 0, 1, 1], [], []>} : vector<16x128xbf16>, vector<128x128xbf16>, vector<16x128xf32> -> vector<16x128xf32>
    %c0_8 = arith.constant 0 : index
    %c0_9 = arith.constant 0 : index
    %11 = vector.load %arg5[%c0_8, %c0_9] : memref<1x128xf32, #tpu.memory_space<vmem>>, vector<1x128xf32>
    %12 = vector.broadcast %11 : vector<1x128xf32> to vector<16x128xf32>
    %13 = arith.addf %10, %12 : vector<16x128xf32>
    %14 = arith.truncf %13 : vector<16x128xf32> to vector<16x128xbf16>
    %15 = math.tanh %14 : vector<16x128xbf16>
    %c0_10 = arith.constant 0 : index
    %c0_11 = arith.constant 0 : index
    %16 = vector.load %arg6[%c0_10, %c0_11] : memref<128x128xbf16, #tpu.memory_space<vmem>>, vector<128x128xbf16>
    %cst_12 = arith.constant dense<0.000000e+00> : vector<16x128xf32>
    %17 = tpu.matmul %15, %16, %cst_12 {dimension_numbers = #tpu.dot_dimension_numbers<[1], [0], [0], [1], [0, 0, 1, 1], [], []>} : vector<16x128xbf16>, vector<128x128xbf16>, vector<16x128xf32> -> vector<16x128xf32>
    %c0_13 = arith.constant 0 : index
    %c0_14 = arith.constant 0 : index
    %18 = vector.load %arg7[%c0_13, %c0_14] : memref<1x128xf32, #tpu.memory_space<vmem>>, vector<1x128xf32>
    %19 = vector.broadcast %18 : vector<1x128xf32> to vector<16x128xf32>
    %20 = arith.addf %17, %19 : vector<16x128xf32>
    %21 = arith.truncf %20 : vector<16x128xf32> to vector<16x128xbf16>
    %c0_15 = arith.constant 0 : index
    %c0_16 = arith.constant 0 : index
    %22 = vector.load %arg8[%c0_15, %c0_16] : memref<16x128xbf16, #tpu.memory_space<vmem>>, vector<16x128xbf16>
    tpu.vector_store %arg8[%c0_15, %c0_16], %21 {strides = array<i32>} : memref<16x128xbf16, #tpu.memory_space<vmem>>, vector<16x128xbf16>,
    return
  }
  func.func @transform_0(%arg0: i32) -> (i32, i32) {
    %c0_i32 = arith.constant 0 : i32
    %c0_i32_0 = arith.constant 0 : i32
    return %arg0, %c0_i32 : i32, i32
  }
  func.func @transform_1(%arg0: i32) -> (i32, i32) {
    %c0_i32 = arith.constant 0 : i32
    %c0_i32_0 = arith.constant 0 : i32
    %c0_i32_1 = arith.constant 0 : i32
    return %c0_i32, %c0_i32_0 : i32, i32
  }
  func.func @transform_2(%arg0: i32) -> (i32, i32) {
    %c0_i32 = arith.constant 0 : i32
    %c0_i32_0 = arith.constant 0 : i32
    %c0_i32_1 = arith.constant 0 : i32
    return %c0_i32, %c0_i32_0 : i32, i32
  }
  func.func @transform_3(%arg0: i32) -> (i32, i32) {
    %c0_i32 = arith.constant 0 : i32
    %c0_i32_0 = arith.constant 0 : i32
    %c0_i32_1 = arith.constant 0 : i32
    return %c0_i32, %c0_i32_0 : i32, i32
  }
  func.func @transform_4(%arg0: i32) -> (i32, i32) {
    %c0_i32 = arith.constant 0 : i32
    %c0_i32_0 = arith.constant 0 : i32
    %c0_i32_1 = arith.constant 0 : i32
    return %c0_i32, %c0_i32_0 : i32, i32
  }
  func.func @transform_5(%arg0: i32) -> (i32, i32) {
    %c0_i32 = arith.constant 0 : i32
    %c0_i32_0 = arith.constant 0 : i32
    %c0_i32_1 = arith.constant 0 : i32
    return %c0_i32, %c0_i32_0 : i32, i32
  }
  func.func @transform_6(%arg0: i32) -> (i32, i32) {
    %c0_i32 = arith.constant 0 : i32
    %c0_i32_0 = arith.constant 0 : i32
    %c0_i32_1 = arith.constant 0 : i32
    return %c0_i32, %c0_i32_0 : i32, i32
  }
  func.func @transform_7(%arg0: i32) -> (i32, i32) {
    %c0_i32 = arith.constant 0 : i32
    %c0_i32_0 = arith.constant 0 : i32
    return %arg0, %c0_i32 : i32, i32
  }
}

</mosaic_0001>

<llo_original>
// kernel: _forward_jit.2
$region0: #{_forward_jit.2}
  #allocation0 [shape = 'u32[]', space=smem, size = 0x4, offset = 0x4, fixed_abs, tag = 'smem constant byte address 0x4 - core index']
  #allocation1 [shape = 'u32[72,128]{1,0:T(1,128)}', space=vmem, size = 0x9000, scoped, tag = 'internal scratch']
  #allocation2 [shape = 'u32[2048]{0}', space=vmem, size = 0x2000, scoped, tag = 'scoped memory for _forward_jit.2']
  #allocation3 [shape = 'u32[2048]{0}', space=vmem, size = 0x2000, scoped, tag = 'scoped memory for _forward_jit.2']
  #allocation4 [shape = 'u32[2048]{0}', space=vmem, size = 0x2000, scoped, tag = 'scoped memory for _forward_jit.2']
  #allocation5 [shape = 'u32[2048]{0}', space=vmem, size = 0x2000, scoped, tag = 'scoped memory for _forward_jit.2']
  #allocation6 [shape = 'u32[2048]{0}', space=vmem, size = 0x2000, scoped, tag = 'scoped memory for _forward_jit.2']
  %s0 = inlined_call_operand.hbm [shape: bf16[32,128], index: 0, kind: input, shape index: {}]
  %s1 = inlined_call_operand.vmem [shape: f32[1,128], index: 1, kind: input, shape index: {}]
  %s2 = inlined_call_operand.hbm [shape: bf16[128,128], index: 2, kind: input, shape index: {}]
  %s3 = inlined_call_operand.vmem [shape: f32[1,128], index: 3, kind: input, shape index: {}]
  %s4 = inlined_call_operand.hbm [shape: bf16[128,128], index: 4, kind: input, shape index: {}]
  %s5 = inlined_call_operand.vmem [shape: f32[1,128], index: 5, kind: input, shape index: {}]
  %s6 = inlined_call_operand.hbm [shape: f32[8,18], index: 6, kind: input, shape index: {}]
  %s7 = inlined_call_operand.<no memory space> [shape: f32[], index: 7, kind: input, shape index: {}]
  %s8 = inlined_call_operand.vmem [shape: bf16[16,128], index: 8, kind: output, shape index: {}]
  %s9 = sld [smem:[#allocation0]]
  $region54: #{_forward_jit.2} parent=0
    _
  %s11 = ssub.s32 1, %s9
  %s12 = scalar_select 0, %s11, %s9
  %v13 = vstv %s7
  $region1: #{_forward_jit.2} parent=0
    #allocation7 [shape = 'u8[4096]{0}', space=vmem, size = 0x1000, scoped, tag = 'operand span for operand 6']
    #allocation8 [shape = 's32[1]{0}', space=sflag, size = 0x4, scoped, tag = 'scoped memory for _forward_jit.2']
    #allocation9 [shape = 'u8[8192]{0}', space=vmem, size = 0x2000, scoped, tag = 'input window, operand 1, single buffered']
    #allocation10 [shape = 's32[1]{0}', space=sflag, size = 0x4, scoped, tag = 'scoped memory for _forward_jit.2']
    #allocation11 [shape = 'u8[32768]{0}', space=vmem, size = 0x8000, scoped, tag = 'input window, operand 3, single buffered']
    #allocation12 [shape = 'u8[32768]{0}', space=vmem, size = 0x8000, scoped, tag = 'input window, operand 5, single buffered']
    #allocation13 [shape = 's32[1]{0}', space=sflag, size = 0x4, scoped, tag = 'scoped memory for _forward_jit.2']
    #allocation14 [shape = 'u8[8192]{0}', space=vmem, size = 0x2000, dematerialized = true, scoped, tag = 'FusionAdapter Buffer %fusion.1 = f32[16,32]{1,0:T(8,128)} fusion(%param_6.1, %param_7), kind=kLoop, calls=%fused_computation.1.clone, metadata={op_name="jit(_forward_jit)/jit(_pad)/pad" stack_frame_id=1}']
    %14 = vsyncpa [#allocation8], 0
    %15 = vsyncpa [#allocation10], 0
    %16 = vsyncpa [#allocation13], 0
    // Predicated region
    $region2: #{_forward_jit.2} parent=1 // pred_check
      _
    $region3: #{_forward_jit.2} parent=1 // pred_check_branch
      %18 = sbr.rel (0) target = $region5
    $region4: #{_forward_jit.2} parent=1 // pred_region
      %20 = vsyncadd [#allocation8], 0
      %s22 = sshll.u32 %s6, 4
      %s23 = int_to_ptr.hbm [resolvable:$true] %s22
      %s24 = sshll.u32 [#allocation7], 4
      %s25 = int_to_ptr.vmem [resolvable:$true] %s24
      %27 = dma.hbm_to_vmem [thread:$0]  %s23, 128, %s25, [#allocation8]
    $region5: #{_forward_jit.2} parent=1 // pred_fallthru
      _
    // Predicated region
    $region6: #{_forward_jit.2} parent=1 // pred_check
      _
    $region7: #{_forward_jit.2} parent=1 // pred_check_branch
      %29 = sbr.rel (0) target = $region9
    $region8: #{_forward_jit.2} parent=1 // pred_region
      %31 = vsyncadd [#allocation10], 0
      %s32 = sshll.u32 %s0, 4
      %s33 = int_to_ptr.hbm [resolvable:$true] %s32
      %s34 = sshll.u32 [#allocation9], 4
      %s35 = int_to_ptr.vmem [resolvable:$true] %s34
      %40 = dma.hbm_to_vmem [thread:$0]  %s33, 256, %s35, [#allocation10], 64, 64, 4
    $region9: #{_forward_jit.2} parent=1 // pred_fallthru
      _
    // Predicated region
    $region10: #{_forward_jit.2} parent=1 // pred_check
      _
    $region11: #{_forward_jit.2} parent=1 // pred_check_branch
      %42 = sbr.rel (0) target = $region13
    $region12: #{_forward_jit.2} parent=1 // pred_region
      _
    $region13: #{_forward_jit.2} parent=1 // pred_fallthru
      _
    // Predicated region
    $region14: #{_forward_jit.2} parent=1 // pred_check
      _
    $region15: #{_forward_jit.2} parent=1 // pred_check_branch
      %44 = sbr.rel (0) target = $region17
    $region16: #{_forward_jit.2} parent=1 // pred_region
      %46 = vsyncadd [#allocation10], 0
      %s47 = sshll.u32 %s2, 4
      %s48 = int_to_ptr.hbm [resolvable:$true] %s47
      %s49 = sshll.u32 [#allocation11], 4
      %s50 = int_to_ptr.vmem [resolvable:$true] %s49
      %55 = dma.hbm_to_vmem [thread:$0]  %s48, 1024, %s50, [#allocation10], 64, 64, 4
    $region17: #{_forward_jit.2} parent=1 // pred_fallthru
      _
    // Predicated region
    $region18: #{_forward_jit.2} parent=1 // pred_check
      _
    $region19: #{_forward_jit.2} parent=1 // pred_check_branch
      %57 = sbr.rel (0) target = $region21
    $region20: #{_forward_jit.2} parent=1 // pred_region
      _
    $region21: #{_forward_jit.2} parent=1 // pred_fallthru
      _
    // Predicated region
    $region22: #{_forward_jit.2} parent=1 // pred_check
      _
    $region23: #{_forward_jit.2} parent=1 // pred_check_branch
      %59 = sbr.rel (0) target = $region25
    $region24: #{_forward_jit.2} parent=1 // pred_region
      %61 = vsyncadd [#allocation13], 0
      %s62 = sshll.u32 %s4, 4
      %s63 = int_to_ptr.hbm [resolvable:$true] %s62
      %s64 = sshll.u32 [#allocation12], 4
      %s65 = int_to_ptr.vmem [resolvable:$true] %s64
      %70 = dma.hbm_to_vmem [thread:$0]  %s63, 1024, %s65, [#allocation13], 64, 64, 4
    $region25: #{_forward_jit.2} parent=1 // pred_fallthru
      _
    // Predicated region
    $region26: #{_forward_jit.2} parent=1 // pred_check
      _
    $region27: #{_forward_jit.2} parent=1 // pred_check_branch
      %72 = sbr.rel (0) target = $region29
    $region28: #{_forward_jit.2} parent=1 // pred_region
      _
    $region29: #{_forward_jit.2} parent=1 // pred_fallthru
      _
    // Predicated region
    $region30: #{_forward_jit.2} parent=1 // pred_check
      _
    $region31: #{_forward_jit.2} parent=1 // pred_check_branch
      %74 = sbr.rel (0) target = $region33
    $region32: #{_forward_jit.2} parent=1 // pred_region
      %76 = dma.done [#allocation8], 128
    $region33: #{_forward_jit.2} parent=1 // pred_fallthru
      _
    // Predicated region
    $region34: #{_forward_jit.2} parent=1 // pred_check
      _
    $region35: #{_forward_jit.2} parent=1 // pred_check_branch
      %78 = sbr.rel (0) target = $region37
    $region36: #{_forward_jit.2} parent=1 // pred_region
      %80 = dma.done [#allocation10], 256
    $region37: #{_forward_jit.2} parent=1 // pred_fallthru
      _
    // Predicated region
    $region38: #{_forward_jit.2} parent=1 // pred_check
      _
    $region39: #{_forward_jit.2} parent=1 // pred_check_branch
      %82 = sbr.rel (0) target = $region41
    $region40: #{_forward_jit.2} parent=1 // pred_region
      %84 = dma.done [#allocation10], 1024
    $region41: #{_forward_jit.2} parent=1 // pred_fallthru
      _
    // Predicated region
    $region42: #{_forward_jit.2} parent=1 // pred_check
      _
    $region43: #{_forward_jit.2} parent=1 // pred_check_branch
      %86 = sbr.rel (0) target = $region45
    $region44: #{_forward_jit.2} parent=1 // pred_region
      %88 = dma.done [#allocation13], 1024
    $region45: #{_forward_jit.2} parent=1 // pred_fallthru
      _
    %v89 = vld [vmem:[#allocation7] sm:$0xff]
    %v90 = vlaneseq
    %v91 = vand.u32 %v90, 127
    %vm93 = vcmp.lt.s32.totalorder %v91, 18
    %v94 = vsel %vm93, %v89, %v13
    %s96 = ssub.s32 256, 1
    %97 = vst [vmem:[#allocation14] sm:%s96] %v94
    %s98 = scalar_lea.vmem [#allocation14], 8
    %s100 = ssub.s32 256, 1
    %101 = vst [vmem:[%s98] sm:%s100] %v13
    %v103 = vld [vmem:[#allocation14] sm:$0xff]
    %v104 = vld [vmem:[#allocation14 + $0x8] sm:$0xff]
    %v105 = vpack.c.bf16 %v104, %v103
    %v106 = vld [vmem:[#allocation9] sm:$0xf]
    %v107 = vld [vmem:[#allocation9 + $0x4] sm:$0xf]
    %v108 = vld [vmem:[#allocation9 + $0x8] sm:$0xf]
    %v109 = vld [vmem:[#allocation9 + $0xc] sm:$0xf]
    %v110 = vld [vmem:[%s1] sm:$0x1]
    %v112 = vperm.slane %v110, 0
    %v118 = vunpack.c.l.b16 %v106
    %v119 = vunpack.c.l.b16 %v107
    %v120 = vunpack.c.l.b16 %v108
    %v121 = vunpack.c.l.b16 %v109
    %v122 = vpack.c.b16 %v119, %v118
    %v123 = vpack.c.b16 %v121, %v120
    %vm126 = vcmask 261120
    %v128 = vsel %vm126, %v105, 0
    %130 = vmatpush.bf16.msra.mxu0 0
    %131 = vmatpush.bf16.msra.mxu0 0
    %132 = vmatpush.bf16.msra.mxu0 0
    %133 = vmatpush.bf16.msra.mxu0 0
    %134 = vmatpush.bf16.msra.mxu0 0
    %135 = vmatpush.bf16.msra.mxu0 0
    %136 = vmatpush.bf16.msra.mxu0 %v123
    %137 = vmatpush.bf16.msra.mxu0 %v122
    %138 = vmatmul.bf16.gmra.mxu0 %v128
    %v139 = vpop.f32.mrf.mxu0
    %v140 = vadd.f32 %v112, %v139
    %v141 = vpop.f32.mrf.mxu0
    %v142 = vadd.f32 %v112, %v141
    %143 = vdwg.mxu0
    %v144 = vpack.c.bf16 %v142, %v140
    %v145 = vunpack.c.l.bf16 %v144
    %v146 = vunpack.c.h.bf16 %v144
    %v147 = vtanh.pop %v145
    %v148 = vtanh.pop %v146
    %v149 = vpack.c.bf16 %v148, %v147
    %v150 = vld [vmem:[#allocation11] sm:$0xf]
    %v151 = vld [vmem:[#allocation11 + $0x4] sm:$0xf]
    %v152 = vld [vmem:[#allocation11 + $0x8] sm:$0xf]
    %v153 = vld [vmem:[#allocation11 + $0xc] sm:$0xf]
    %v154 = vld [vmem:[#allocation11 + $0x10] sm:$0xf]
    %v155 = vld [vmem:[#allocation11 + $0x14] sm:$0xf]
    %v156 = vld [vmem:[#allocation11 + $0x18] sm:$0xf]
    %v157 = vld [vmem:[#allocation11 + $0x1c] sm:$0xf]
    %v158 = vld [vmem:[#allocation11 + $0x20] sm:$0xf]
    %v159 = vld [vmem:[#allocation11 + $0x24] sm:$0xf]
    %v160 = vld [vmem:[#allocation11 + $0x28] sm:$0xf]
    %v161 = vld [vmem:[#allocation11 + $0x2c] sm:$0xf]
    %v162 = vld [vmem:[#allocation11 + $0x30] sm:$0xf]
    %v163 = vld [vmem:[#allocation11 + $0x34] sm:$0xf]
    %v164 = vld [vmem:[#allocation11 + $0x38] sm:$0xf]
    %v165 = vld [vmem:[#allocation11 + $0x3c] sm:$0xf]
    %v166 = vld [vmem:[%s3] sm:$0x1]
    %v168 = vperm.slane %v166, 0
    %v186 = vunpack.c.l.b16 %v150
    %v187 = vunpack.c.l.b16 %v151
    %v188 = vunpack.c.l.b16 %v152
    %v189 = vunpack.c.l.b16 %v153
    %v190 = vunpack.c.l.b16 %v154
    %v191 = vunpack.c.l.b16 %v155
    %v192 = vunpack.c.l.b16 %v156
    %v193 = vunpack.c.l.b16 %v157
    %v194 = vunpack.c.l.b16 %v158
    %v195 = vunpack.c.l.b16 %v159
    %v196 = vunpack.c.l.b16 %v160
    %v197 = vunpack.c.l.b16 %v161
    %v198 = vunpack.c.l.b16 %v162
    %v199 = vunpack.c.l.b16 %v163
    %v200 = vunpack.c.l.b16 %v164
    %v201 = vunpack.c.l.b16 %v165
    %v202 = vpack.c.b16 %v187, %v186
    %v203 = vpack.c.b16 %v189, %v188
    %v204 = vpack.c.b16 %v191, %v190
    %v205 = vpack.c.b16 %v193, %v192
    %v206 = vpack.c.b16 %v195, %v194
    %v207 = vpack.c.b16 %v197, %v196
    %v208 = vpack.c.b16 %v199, %v198
    %v209 = vpack.c.b16 %v201, %v200
    %218 = vmatpush.bf16.msra.mxu0 %v209
    %219 = vmatpush.bf16.msra.mxu0 %v208
    %220 = vmatpush.bf16.msra.mxu0 %v207
    %221 = vmatpush.bf16.msra.mxu0 %v206
    %222 = vmatpush.bf16.msra.mxu0 %v205
    %223 = vmatpush.bf16.msra.mxu0 %v204
    %224 = vmatpush.bf16.msra.mxu0 %v203
    %225 = vmatpush.bf16.msra.mxu0 %v202
    %226 = vmatmul.bf16.gmra.mxu0 %v149
    %v227 = vpop.f32.mrf.mxu0
    %v228 = vadd.f32 %v168, %v227
    %v229 = vpop.f32.mrf.mxu0
    %v230 = vadd.f32 %v168, %v229
    %231 = vdwg.mxu0
    %v232 = vpack.c.bf16 %v230, %v228
    %v233 = vunpack.c.l.bf16 %v232
    %v234 = vunpack.c.h.bf16 %v232
    %v235 = vtanh.pop %v233
    %v236 = vtanh.pop %v234
    %v237 = vpack.c.bf16 %v236, %v235
    %v238 = vld [vmem:[#allocation12] sm:$0xf]
    %v239 = vld [vmem:[#allocation12 + $0x4] sm:$0xf]
    %v240 = vld [vmem:[#allocation12 + $0x8] sm:$0xf]
    %v241 = vld [vmem:[#allocation12 + $0xc] sm:$0xf]
    %v242 = vld [vmem:[#allocation12 + $0x10] sm:$0xf]
    %v243 = vld [vmem:[#allocation12 + $0x14] sm:$0xf]
    %v244 = vld [vmem:[#allocation12 + $0x18] sm:$0xf]
    %v245 = vld [vmem:[#allocation12 + $0x1c] sm:$0xf]
    %v246 = vld [vmem:[#allocation12 + $0x20] sm:$0xf]
    %v247 = vld [vmem:[#allocation12 + $0x24] sm:$0xf]
    %v248 = vld [vmem:[#allocation12 + $0x28] sm:$0xf]
    %v249 = vld [vmem:[#allocation12 + $0x2c] sm:$0xf]
    %v250 = vld [vmem:[#allocation12 + $0x30] sm:$0xf]
    %v251 = vld [vmem:[#allocation12 + $0x34] sm:$0xf]
    %v252 = vld [vmem:[#allocation12 + $0x38] sm:$0xf]
    %v253 = vld [vmem:[#allocation12 + $0x3c] sm:$0xf]
    %v254 = vld [vmem:[%s5] sm:$0x1]
    %v256 = vperm.slane %v254, 0
    %v274 = vunpack.c.l.b16 %v238
    %v275 = vunpack.c.l.b16 %v239
    %v276 = vunpack.c.l.b16 %v240
    %v277 = vunpack.c.l.b16 %v241
    %v278 = vunpack.c.l.b16 %v242
    %v279 = vunpack.c.l.b16 %v243
    %v280 = vunpack.c.l.b16 %v244
    %v281 = vunpack.c.l.b16 %v245
    %v282 = vunpack.c.l.b16 %v246
    %v283 = vunpack.c.l.b16 %v247
    %v284 = vunpack.c.l.b16 %v248
    %v285 = vunpack.c.l.b16 %v249
    %v286 = vunpack.c.l.b16 %v250
    %v287 = vunpack.c.l.b16 %v251
    %v288 = vunpack.c.l.b16 %v252
    %v289 = vunpack.c.l.b16 %v253
    %v290 = vpack.c.b16 %v275, %v274
    %v291 = vpack.c.b16 %v277, %v276
    %v292 = vpack.c.b16 %v279, %v278
    %v293 = vpack.c.b16 %v281, %v280
    %v294 = vpack.c.b16 %v283, %v282
    %v295 = vpack.c.b16 %v285, %v284
    %v296 = vpack.c.b16 %v287, %v286
    %v297 = vpack.c.b16 %v289, %v288
    %306 = vmatpush.bf16.msra.mxu0 %v297
    %307 = vmatpush.bf16.msra.mxu0 %v296
    %308 = vmatpush.bf16.msra.mxu0 %v295
    %309 = vmatpush.bf16.msra.mxu0 %v294
    %310 = vmatpush.bf16.msra.mxu0 %v293
    %311 = vmatpush.bf16.msra.mxu0 %v292
    %312 = vmatpush.bf16.msra.mxu0 %v291
    %313 = vmatpush.bf16.msra.mxu0 %v290
    %314 = vmatmul.bf16.gmra.mxu0 %v237
    %v315 = vpop.f32.mrf.mxu0
    %v316 = vadd.f32 %v256, %v315
    %v317 = vpop.f32.mrf.mxu0
    %v318 = vadd.f32 %v256, %v317
    %319 = vdwg.mxu0
    %v320 = vpack.c.bf16 %v316, %v316
    %v321 = vpack.c.bf16 %v318, %v318
    %322 = vst [vmem:[%s8] sm:$0xf] %v320
    %323 = vst [vmem:[%s8 + $0x4] sm:$0xf] %v321
    // Predicated region
    $region46: #{_forward_jit.2} parent=1 // pred_check
      _
    $region47: #{_forward_jit.2} parent=1 // pred_check_branch
      %325 = sbr.rel (0) target = $region49
    $region48: #{_forward_jit.2} parent=1 // pred_region
      _
    $region49: #{_forward_jit.2} parent=1 // pred_fallthru
      _
    // Predicated region
    $region50: #{_forward_jit.2} parent=1 // pred_check
      _
    $region51: #{_forward_jit.2} parent=1 // pred_check_branch
      %327 = sbr.rel (0) target = $region53
    $region52: #{_forward_jit.2} parent=1 // pred_region
      _
    $region53: #{_forward_jit.2} parent=1 // pred_fallthru
      _
    %328 = vsyncpa [#allocation8], 1
    %329 = vsyncpa [#allocation10], 1
    %330 = vsyncpa [#allocation13], 1

</llo_original>
